<compile_context>
chip_gen: v7x
topology: tpu7x:2x2x1
jax: 0.10.0
libtpu: 0.0.40
codegen_flags: <defaults>
</compile_context>

<pallas_src>
from functools import partial

import numpy as np
import jax
import jax.numpy as jnp
from jax.experimental import pallas as pl
from jax.experimental.pallas import tpu as pltpu

# Operator dimensions (lane-dense; padded to multiples of 128 where needed).
K_IN = 784    # 28*28 flattened image (full last dim of x -> legal block width)
N1 = 256      # conv1 output: 196 valid (14*14) + zero padding   (2 * 128)
N2 = 128      # conv2 output:  49 valid (7*7)   + zero padding   (1 * 128)
N3 = 128      # logits:        10 valid         + zero padding   (1 * 128)


def _round_up(n, m):
    return ((n + m - 1) // m) * m


def _conv_as_matrix(w3x3_np, H, W, stride=2, pad=1):
    """Build M of shape (H*W, Hout*Wout) so that x_flat @ M == conv2d(x)[flat]."""
    K = w3x3_np.shape[0]
    Hout = (H + 2 * pad - K) // stride + 1
    Wout = (W + 2 * pad - K) // stride + 1
    M = np.zeros((H * W, Hout * Wout), dtype=np.float32)
    for oh in range(Hout):
        for ow in range(Wout):
            for kh in range(K):
                for kw in range(K):
                    ih = oh * stride - pad + kh
                    iw = ow * stride - pad + kw
                    if 0 <= ih < H and 0 <= iw < W:
                        M[ih * W + iw, oh * Wout + ow] = w3x3_np[kh, kw]
    return M, Hout, Wout


# ----------------------------------------------------------------------------
# Pallas kernel: three fused MXU matmuls with in-body bf16 cast, bias adds on
# the f32 accumulators, and ReLU between them.  bf16 lane-dense output.
# ----------------------------------------------------------------------------
def mnist_kernel(x_ref, m1_ref, m2_ref, wfc_ref, b1_ref, b2_ref, bfc_ref, o_ref):
    # conv1 (as matmul) + bias + ReLU
    x = x_ref[...].astype(jnp.bfloat16)                      # f32 -> bf16 in-kernel
    h1 = jnp.dot(x, m1_ref[...], preferred_element_type=jnp.float32)
    h1 = jnp.maximum(h1 + b1_ref[...], 0.0).astype(jnp.bfloat16)
    # conv2 (as matmul) + bias + ReLU
    h2 = jnp.dot(h1, m2_ref[...], preferred_element_type=jnp.float32)
    h2 = jnp.maximum(h2 + b2_ref[...], 0.0).astype(jnp.bfloat16)
    # fc1 + bias; lane-dense 128-wide bf16 store (no masked vst)
    out = jnp.dot(h2, wfc_ref[...], preferred_element_type=jnp.float32)
    o_ref[...] = (out + bfc_ref[...]).astype(jnp.bfloat16)


@partial(jax.jit, static_argnames=("tb",))
def mnist_forward_pallas(x_nchw, kernel_params, tb=1024):
    """x_nchw: (B, 1, 28, 28) float32 -> logits (B, 10) bfloat16."""
    B = x_nchw.shape[0]
    M1, M2, WFC, B1, B2, BFC = kernel_params

    # Flatten NCHW (C == 1) row-major -> (B, 784); pure layout change.
    x_flat = x_nchw.reshape(B, K_IN)
    if B < 8:                                   # tiny pad only for sub-sublane batches
        x_flat = jnp.pad(x_flat, ((0, 8 - B), (0, 0)))
    Bp = x_flat.shape[0]

    # Batch tile: multiple of 8 sublanes, capped at tb, and >=2 grid steps when
    # possible so both v7x TensorCores get work.
    TB = max(8, min(tb, _round_up(pl.cdiv(Bp, 2), 8)))
    grid = (pl.cdiv(Bp, TB),)                   # ragged last tile masked by Pallas

    def wspec(shape):                           # VMEM-resident operand (constant map)
        return pl.BlockSpec(shape, lambda i: (0, 0))

    out_padded = pl.pallas_call(
        mnist_kernel,
        out_shape=jax.ShapeDtypeStruct((Bp, N3), jnp.bfloat16),
        grid=grid,
        in_specs=[
            pl.BlockSpec((TB, K_IN), lambda i: (i, 0)),   # x: one tile per grid step
            wspec((K_IN, N1)),                            # M1
            wspec((N1, N2)),                              # M2
            wspec((N2, N3)),                              # WFC
            wspec((1, N1)),                               # conv1 bias (broadcast row)
            wspec((1, N2)),                               # conv2 bias
            wspec((1, N3)),                               # fc1 bias
        ],
        out_specs=pl.BlockSpec((TB, N3), lambda i: (i, 0)),
        compiler_params=pltpu.CompilerParams(
            dimension_semantics=("parallel",),            # shard batch tiles (v7x)
            vmem_limit_bytes=32 * 1024 * 1024,
        ),
    )(x_flat, M1, M2, WFC, B1, B2, BFC)

    # Garbage rows from the ragged last tile / B<8 pad are sliced off here;
    # nothing ever reduces over the padded output.
    return out_padded[:B, :10]


# ----------------------------------------------------------------------------
# Parameter setup (plain numpy / JAX glue).
# ----------------------------------------------------------------------------
def init_params(key):
    """Deterministic synthetic parameters with the same shapes as MnistModel."""
    k1, k2, k3, k4, k5, k6 = jax.random.split(key, 6)
    w1 = jax.random.normal(k1, (3, 3), jnp.float32) * 0.3       # conv1.weight[0,0]
    b1 = jax.random.normal(k2, (), jnp.float32) * 0.1           # conv1.bias[0]
    w2 = jax.random.normal(k3, (3, 3), jnp.float32) * 0.3       # conv2.weight[0,0]
    b2 = jax.random.normal(k4, (), jnp.float32) * 0.1           # conv2.bias[0]
    wfc = jax.random.normal(k5, (10, 49), jnp.float32) * 0.1    # fc1.weight
    bfc = jax.random.normal(k6, (10,), jnp.float32) * 0.1       # fc1.bias
    return w1, b1, w2, b2, wfc, bfc


def build_kernel_params(w1, b1, w2, b2, wfc, bfc):
    """Lane-padded bf16 operators + f32 bias rows (added on the accumulators)."""
    m1, H1, W1 = _conv_as_matrix(np.asarray(w1), 28, 28)        # (784, 196)
    m2, H2, W2 = _conv_as_matrix(np.asarray(w2), H1, W1)        # (196, 49)
    n1v, n2v = H1 * W1, H2 * W2                                 # 196, 49

    M1 = np.zeros((K_IN, N1), np.float32); M1[:, :n1v] = m1
    M2 = np.zeros((N1, N2), np.float32);   M2[:n1v, :n2v] = m2
    WFC = np.zeros((N2, N3), np.float32);  WFC[:n2v, :10] = np.asarray(wfc).T

    B1 = np.zeros((1, N1), np.float32); B1[0, :n1v] = float(b1)
    B2 = np.zeros((1, N2), np.float32); B2[0, :n2v] = float(b2)
    BFC = np.zeros((1, N3), np.float32); BFC[0, :10] = np.asarray(bfc)

    return (jnp.asarray(M1, jnp.bfloat16),
            jnp.asarray(M2, jnp.bfloat16),
            jnp.asarray(WFC, jnp.bfloat16),
            jnp.asarray(B1), jnp.asarray(B2), jnp.asarray(BFC))


# ----------------------------------------------------------------------------
# References.
# ----------------------------------------------------------------------------
def reference_forward_f32(x, w1, b1, w2, b2, wfc, bfc):
    """Pure-JAX f32 reference mirroring the PyTorch module exactly."""
    def conv(inp, w, b):
        y = jax.lax.conv_general_dilated(
            inp, w.reshape(1, 1, 3, 3), window_strides=(2, 2),
            padding=((1, 1), (1, 1)),
            dimension_numbers=("NCHW", "OIHW", "NCHW"))
        return jax.nn.relu(y + b)
    h = conv(x, w1, b1)
    h = conv(h, w2, b2)
    h = h.reshape(x.shape[0], -1)
    return h @ wfc.T + bfc


def reference_forward_bf16(x_nchw, kernel_params):
    """Emulates the kernel's bf16-input / f32-accumulate / bf16-output numerics."""
    M1, M2, WFC, B1, B2, BFC = kernel_params
    M1, M2, WFC = (m.astype(jnp.float32) for m in (M1, M2, WFC))
    B = x_nchw.shape[0]
    x = x_nchw.reshape(B, -1).astype(jnp.bfloat16).astype(jnp.float32)
    h1 = jnp.maximum(x @ M1 + B1, 0.0).astype(jnp.bfloat16).astype(jnp.float32)
    h2 = jnp.maximum(h1 @ M2 + B2, 0.0).astype(jnp.bfloat16).astype(jnp.float32)
    out = (h2 @ WFC + BFC).astype(jnp.bfloat16)
    return out[:, :10]


if __name__ == "__main__":
    key = jax.random.PRNGKey(0)
    k_x, k_p, k_x2 = jax.random.split(key, 3)

    w1, b1, w2, b2, wfc, bfc = init_params(k_p)
    kernel_params = build_kernel_params(w1, b1, w2, b2, wfc, bfc)

    # --- small batch (matches the module's expected MNIST shape) ---
    x = jax.random.normal(k_x, (2, 1, 28, 28), jnp.float32)
    out = jax.block_until_ready(mnist_forward_pallas(x, kernel_params))
    assert out.shape == (2, 10)

    ref_emul = reference_forward_bf16(x, kernel_params)
    assert jnp.allclose(out.astype(jnp.float32), ref_emul.astype(jnp.float32),
                        atol=5e-2, rtol=5e-2), "mismatch vs bf16 reference"

    # bf16 weights/activations/output are intentional (MNIST-scale); this hides
    # ~1e-2-level error vs the exact f32 math, hence the loose tolerance.
    ref_f32 = reference_forward_f32(x, w1, b1, w2, b2, wfc, bfc)
    assert jnp.allclose(out.astype(jnp.float32), ref_f32,
                        atol=2e-1, rtol=2e-1), "mismatch vs f32 reference"

    # --- larger batch exercising the multi-tile grid + ragged last tile path ---
    x_big = jax.random.normal(k_x2, (300, 1, 28, 28), jnp.float32)
    out_big = jax.block_until_ready(mnist_forward_pallas(x_big, kernel_params, tb=128))
    assert out_big.shape == (300, 10)
    ref_big = reference_forward_bf16(x_big, kernel_params)
    assert jnp.allclose(out_big.astype(jnp.float32), ref_big.astype(jnp.float32),
                        atol=5e-2, rtol=5e-2), "mismatch vs bf16 reference (tiled/ragged)"

    print("KERNEL_OK")
</pallas_src>

<mosaic_0001>
module attributes {stable_mosaic.version = 11 : i64} {
  func.func @mnist_kernel(%arg0: i32, %arg1: memref<8x784xf32, #tpu.memory_space<vmem>>, %arg2: memref<784x256xbf16, #tpu.memory_space<vmem>>, %arg3: memref<256x128xbf16, #tpu.memory_space<vmem>>, %arg4: memref<128x128xbf16, #tpu.memory_space<vmem>>, %arg5: memref<1x256xf32, #tpu.memory_space<vmem>>, %arg6: memref<1x128xf32, #tpu.memory_space<vmem>>, %arg7: memref<1x128xf32, #tpu.memory_space<vmem>>, %arg8: memref<8x128xbf16, #tpu.memory_space<vmem>>) attributes {dimension_semantics = [#tpu.dimension_semantics<parallel>], iteration_bounds = array<i64: 1>, scalar_prefetch = 0 : i64, scratch_operands = 0 : i64, tpu.core_type = #tpu.core_type<tc>, window_params = [{transform_indices = @transform_0, window_bounds = array<i64: 8, 784>}, {pipeline_mode = #tpu.pipeline_mode<synchronous>, transform_indices = @transform_1, window_bounds = array<i64: 784, 256>}, {pipeline_mode = #tpu.pipeline_mode<synchronous>, transform_indices = @transform_2, window_bounds = array<i64: 256, 128>}, {pipeline_mode = #tpu.pipeline_mode<synchronous>, transform_indices = @transform_3, window_bounds = array<i64: 128, 128>}, {pipeline_mode = #tpu.pipeline_mode<synchronous>, transform_indices = @transform_4, window_bounds = array<i64: 1, 256>}, {pipeline_mode = #tpu.pipeline_mode<synchronous>, transform_indices = @transform_5, window_bounds = array<i64: 1, 128>}, {pipeline_mode = #tpu.pipeline_mode<synchronous>, transform_indices = @transform_6, window_bounds = array<i64: 1, 128>}, {transform_indices = @transform_7, window_bounds = array<i64: 8, 128>}]} {
    %c0 = arith.constant 0 : index
    %c0_0 = arith.constant 0 : index
    %0 = vector.load %arg1[%c0, %c0_0] : memref<8x784xf32, #tpu.memory_space<vmem>>, vector<8x784xf32>
    %1 = arith.truncf %0 : vector<8x784xf32> to vector<8x784xbf16>
    %c0_1 = arith.constant 0 : index
    %c0_2 = arith.constant 0 : index
    %2 = vector.load %arg2[%c0_1, %c0_2] : memref<784x256xbf16, #tpu.memory_space<vmem>>, vector<784x256xbf16>
    %cst = arith.constant dense<0.000000e+00> : vector<8x256xf32>
    %3 = tpu.matmul %1, %2, %cst {dimension_numbers = #tpu.dot_dimension_numbers<[1], [0], [0], [1], [0, 0, 1, 1], [], []>} : vector<8x784xbf16>, vector<784x256xbf16>, vector<8x256xf32> -> vector<8x256xf32>
    %c0_3 = arith.constant 0 : index
    %c0_4 = arith.constant 0 : index
    %4 = vector.load %arg5[%c0_3, %c0_4] : memref<1x256xf32, #tpu.memory_space<vmem>>, vector<1x256xf32>
    %5 = vector.broadcast %4 : vector<1x256xf32> to vector<8x256xf32>
    %6 = arith.addf %3, %5 : vector<8x256xf32>
    %cst_5 = arith.constant 0.000000e+00 : f32
    %7 = vector.broadcast %cst_5 : f32 to vector<8x256xf32>
    %8 = arith.maximumf %6, %7 : vector<8x256xf32>
    %9 = arith.truncf %8 : vector<8x256xf32> to vector<8x256xbf16>
    %c0_6 = arith.constant 0 : index
    %c0_7 = arith.constant 0 : index
    %10 = vector.load %arg3[%c0_6, %c0_7] : memref<256x128xbf16, #tpu.memory_space<vmem>>, vector<256x128xbf16>
    %cst_8 = arith.constant dense<0.000000e+00> : vector<8x128xf32>
    %11 = tpu.matmul %9, %10, %cst_8 {dimension_numbers = #tpu.dot_dimension_numbers<[1], [0], [0], [1], [0, 0, 1, 1], [], []>} : vector<8x256xbf16>, vector<256x128xbf16>, vector<8x128xf32> -> vector<8x128xf32>
    %c0_9 = arith.constant 0 : index
    %c0_10 = arith.constant 0 : index
    %12 = vector.load %arg6[%c0_9, %c0_10] : memref<1x128xf32, #tpu.memory_space<vmem>>, vector<1x128xf32>
    %13 = vector.broadcast %12 : vector<1x128xf32> to vector<8x128xf32>
    %14 = arith.addf %11, %13 : vector<8x128xf32>
    %cst_11 = arith.constant 0.000000e+00 : f32
    %15 = vector.broadcast %cst_11 : f32 to vector<8x128xf32>
    %16 = arith.maximumf %14, %15 : vector<8x128xf32>
    %17 = arith.truncf %16 : vector<8x128xf32> to vector<8x128xbf16>
    %c0_12 = arith.constant 0 : index
    %c0_13 = arith.constant 0 : index
    %18 = vector.load %arg4[%c0_12, %c0_13] : memref<128x128xbf16, #tpu.memory_space<vmem>>, vector<128x128xbf16>
    %cst_14 = arith.constant dense<0.000000e+00> : vector<8x128xf32>
    %19 = tpu.matmul %17, %18, %cst_14 {dimension_numbers = #tpu.dot_dimension_numbers<[1], [0], [0], [1], [0, 0, 1, 1], [], []>} : vector<8x128xbf16>, vector<128x128xbf16>, vector<8x128xf32> -> vector<8x128xf32>
    %c0_15 = arith.constant 0 : index
    %c0_16 = arith.constant 0 : index
    %20 = vector.load %arg7[%c0_15, %c0_16] : memref<1x128xf32, #tpu.memory_space<vmem>>, vector<1x128xf32>
    %21 = vector.broadcast %20 : vector<1x128xf32> to vector<8x128xf32>
    %22 = arith.addf %19, %21 : vector<8x128xf32>
    %23 = arith.truncf %22 : vector<8x128xf32> to vector<8x128xbf16>
    %c0_17 = arith.constant 0 : index
    %c0_18 = arith.constant 0 : index
    %24 = vector.load %arg8[%c0_17, %c0_18] : memref<8x128xbf16, #tpu.memory_space<vmem>>, vector<8x128xbf16>
    tpu.vector_store %arg8[%c0_17, %c0_18], %23 {strides = array<i32>} : memref<8x128xbf16, #tpu.memory_space<vmem>>, vector<8x128xbf16>,
    return
  }
  func.func @transform_0(%arg0: i32) -> (i32, i32) {
    %c0_i32 = arith.constant 0 : i32
    %c0_i32_0 = arith.constant 0 : i32
    return %arg0, %c0_i32 : i32, i32
  }
  func.func @transform_1(%arg0: i32) -> (i32, i32) {
    %c0_i32 = arith.constant 0 : i32
    %c0_i32_0 = arith.constant 0 : i32
    %c0_i32_1 = arith.constant 0 : i32
    return %c0_i32, %c0_i32_0 : i32, i32
  }
  func.func @transform_2(%arg0: i32) -> (i32, i32) {
    %c0_i32 = arith.constant 0 : i32
    %c0_i32_0 = arith.constant 0 : i32
    %c0_i32_1 = arith.constant 0 : i32
    return %c0_i32, %c0_i32_0 : i32, i32
  }
  func.func @transform_3(%arg0: i32) -> (i32, i32) {
    %c0_i32 = arith.constant 0 : i32
    %c0_i32_0 = arith.constant 0 : i32
    %c0_i32_1 = arith.constant 0 : i32
    return %c0_i32, %c0_i32_0 : i32, i32
  }
  func.func @transform_4(%arg0: i32) -> (i32, i32) {
    %c0_i32 = arith.constant 0 : i32
    %c0_i32_0 = arith.constant 0 : i32
    %c0_i32_1 = arith.constant 0 : i32
    return %c0_i32, %c0_i32_0 : i32, i32
  }
  func.func @transform_5(%arg0: i32) -> (i32, i32) {
    %c0_i32 = arith.constant 0 : i32
    %c0_i32_0 = arith.constant 0 : i32
    %c0_i32_1 = arith.constant 0 : i32
    return %c0_i32, %c0_i32_0 : i32, i32
  }
  func.func @transform_6(%arg0: i32) -> (i32, i32) {
    %c0_i32 = arith.constant 0 : i32
    %c0_i32_0 = arith.constant 0 : i32
    %c0_i32_1 = arith.constant 0 : i32
    return %c0_i32, %c0_i32_0 : i32, i32
  }
  func.func @transform_7(%arg0: i32) -> (i32, i32) {
    %c0_i32 = arith.constant 0 : i32
    %c0_i32_0 = arith.constant 0 : i32
    return %arg0, %c0_i32 : i32, i32
  }
}

</mosaic_0001>

<llo_original>
// kernel: mnist_forward_pallas.1
$region0: #{mnist_forward_pallas.1}
  #allocation0 [shape = 'u32[]', space=smem, size = 0x4, offset = 0x4, fixed_abs, tag = 'smem constant byte address 0x4 - core index']
  #allocation1 [shape = 'u32[144,128]{1,0:T(1,128)}', space=vmem, size = 0x12000, scoped, tag = 'internal scratch']
  %s0 = inlined_call_operand.vmem [shape: f32[8,784], index: 0, kind: input, shape index: {}]
  %s1 = inlined_call_operand.hbm [shape: bf16[784,256], index: 1, kind: input, shape index: {}]
  %s2 = inlined_call_operand.vmem [shape: bf16[256,128], index: 2, kind: input, shape index: {}]
  %s3 = inlined_call_operand.vmem [shape: bf16[128,128], index: 3, kind: input, shape index: {}]
  %s4 = inlined_call_operand.vmem [shape: f32[1,256], index: 4, kind: input, shape index: {}]
  %s5 = inlined_call_operand.vmem [shape: f32[1,128], index: 5, kind: input, shape index: {}]
  %s6 = inlined_call_operand.vmem [shape: f32[1,128], index: 6, kind: input, shape index: {}]
  %s7 = inlined_call_operand.vmem [shape: bf16[8,128], index: 7, kind: output, shape index: {}]
  %s8 = sld [smem:[#allocation0]]
  $region42: #{mnist_forward_pallas.1} parent=0
    _
  %s10 = ssub.s32 1, %s8
  %s11 = scalar_select 0, %s10, %s8
  $region1: #{mnist_forward_pallas.1} parent=0
    #allocation2 [shape = 'u8[401408]{0}', space=vmem, size = 0x62000, scoped, tag = 'input window, operand 1, single buffered']
    #allocation3 [shape = 's32[1]{0}', space=sflag, size = 0x4, scoped, tag = 'scoped memory for mnist_forward_pallas.1']
    %12 = vsyncpa [#allocation3], 0
    // Predicated region
    $region2: #{mnist_forward_pallas.1} parent=1 // pred_check
      _
    $region3: #{mnist_forward_pallas.1} parent=1 // pred_check_branch
      %14 = sbr.rel (0) target = $region5
    $region4: #{mnist_forward_pallas.1} parent=1 // pred_region
      _
    $region5: #{mnist_forward_pallas.1} parent=1 // pred_fallthru
      _
    // Predicated region
    $region6: #{mnist_forward_pallas.1} parent=1 // pred_check
      _
    $region7: #{mnist_forward_pallas.1} parent=1 // pred_check_branch
      %16 = sbr.rel (0) target = $region9
    $region8: #{mnist_forward_pallas.1} parent=1 // pred_region
      %s18 = ssub.s32 12544, 12544
      %19 = vsyncadd [#allocation3], %s18
      %s20 = sshll.u32 [#allocation2], 4
      %s21 = int_to_ptr.vmem [resolvable:$true] %s20
      %26 = dma.hbm_to_vmem [thread:$0]  %s1, 12544, %s21, [#allocation3], 128, 128, 8
    $region9: #{mnist_forward_pallas.1} parent=1 // pred_fallthru
      _
    // Predicated region
    $region10: #{mnist_forward_pallas.1} parent=1 // pred_check
      _
    $region11: #{mnist_forward_pallas.1} parent=1 // pred_check_branch
      %28 = sbr.rel (0) target = $region13
    $region12: #{mnist_forward_pallas.1} parent=1 // pred_region
      _
    $region13: #{mnist_forward_pallas.1} parent=1 // pred_fallthru
      _
    // Predicated region
    $region14: #{mnist_forward_pallas.1} parent=1 // pred_check
      _
    $region15: #{mnist_forward_pallas.1} parent=1 // pred_check_branch
      %30 = sbr.rel (0) target = $region17
    $region16: #{mnist_forward_pallas.1} parent=1 // pred_region
      _
    $region17: #{mnist_forward_pallas.1} parent=1 // pred_fallthru
      _
    // Predicated region
    $region18: #{mnist_forward_pallas.1} parent=1 // pred_check
      _
    $region19: #{mnist_forward_pallas.1} parent=1 // pred_check_branch
      %32 = sbr.rel (0) target = $region21
    $region20: #{mnist_forward_pallas.1} parent=1 // pred_region
      _
    $region21: #{mnist_forward_pallas.1} parent=1 // pred_fallthru
      _
    // Predicated region
    $region22: #{mnist_forward_pallas.1} parent=1 // pred_check
      _
    $region23: #{mnist_forward_pallas.1} parent=1 // pred_check_branch
      %34 = sbr.rel (0) target = $region25
    $region24: #{mnist_forward_pallas.1} parent=1 // pred_region
      _
    $region25: #{mnist_forward_pallas.1} parent=1 // pred_fallthru
      _
    // Predicated region
    $region26: #{mnist_forward_pallas.1} parent=1 // pred_check
      _
    $region27: #{mnist_forward_pallas.1} parent=1 // pred_check_branch
      %36 = sbr.rel (0) target = $region29
    $region28: #{mnist_forward_pallas.1} parent=1 // pred_region
      _
    $region29: #{mnist_forward_pallas.1} parent=1 // pred_fallthru
      _
    // Predicated region
    $region30: #{mnist_forward_pallas.1} parent=1 // pred_check
      _
    $region31: #{mnist_forward_pallas.1} parent=1 // pred_check_branch
      %38 = sbr.rel (0) target = $region33
    $region32: #{mnist_forward_pallas.1} parent=1 // pred_region
      %39 = dma.done [#allocation3], 12544
    $region33: #{mnist_forward_pallas.1} parent=1 // pred_fallthru
      _
    %v41 = vld [vmem:[%s0] sm:$0xff]
    %v42 = vld [vmem:[%s0 + $0x8] sm:$0xff]
    %v43 = vld [vmem:[%s0 + $0x10] sm:$0xff]
    %v44 = vld [vmem:[%s0 + $0x18] sm:$0xff]
    %v45 = vld [vmem:[%s0 + $0x20] sm:$0xff]
    %v46 = vld [vmem:[%s0 + $0x28] sm:$0xff]
    %v47 = vld [vmem:[%s0 + $0x30] sm:$0xff]
    %v48 = vpack.c.bf16 %v41, %v41
    %v49 = vpack.c.bf16 %v42, %v42
    %v50 = vpack.c.bf16 %v43, %v43
    %v51 = vpack.c.bf16 %v44, %v44
    %v52 = vpack.c.bf16 %v45, %v45
    %v53 = vpack.c.bf16 %v46, %v46
    %v54 = vpack.c.bf16 %v47, %v47
    %v55 = vld [vmem:[#allocation2] sm:$0xff]
    %v56 = vld [vmem:[#allocation2 + $0x8] sm:$0xff]
    %v57 = vld [vmem:[#allocation2 + $0x10] sm:$0xff]
    %v58 = vld [vmem:[#allocation2 + $0x18] sm:$0xff]
    %v59 = vld [vmem:[#allocation2 + $0x20] sm:$0xff]
    %v60 = vld [vmem:[#allocation2 + $0x28] sm:$0xff]
    %v61 = vld [vmem:[#allocation2 + $0x30] sm:$0xff]
    %v62 = vld [vmem:[#allocation2 + $0x38] sm:$0xff]
    %v63 = vld [vmem:[#allocation2 + $0x40] sm:$0xff]
    %v64 = vld [vmem:[#allocation2 + $0x48] sm:$0xff]
    %v65 = vld [vmem:[#allocation2 + $0x50] sm:$0xff]
    %v66 = vld [vmem:[#allocation2 + $0x58] sm:$0xff]
    %v67 = vld [vmem:[#allocation2 + $0x60] sm:$0xff]
    %v68 = vld [vmem:[#allocation2 + $0x68] sm:$0xff]
    %v69 = vld [vmem:[#allocation2 + $0x70] sm:$0xff]
    %v70 = vld [vmem:[#allocation2 + $0x78] sm:$0xff]
    %v71 = vld [vmem:[#allocation2 + $0x80] sm:$0xff]
    %v72 = vld [vmem:[#allocation2 + $0x88] sm:$0xff]
    %v73 = vld [vmem:[#allocation2 + $0x90] sm:$0xff]
    %v74 = vld [vmem:[#allocation2 + $0x98] sm:$0xff]
    %v75 = vld [vmem:[#allocation2 + $0xa0] sm:$0xff]
    %v76 = vld [vmem:[#allocation2 + $0xa8] sm:$0xff]
    %v77 = vld [vmem:[#allocation2 + $0xb0] sm:$0xff]
    %v78 = vld [vmem:[#allocation2 + $0xb8] sm:$0xff]
    %v79 = vld [vmem:[#allocation2 + $0xc0] sm:$0xff]
    %v80 = vld [vmem:[#allocation2 + $0xc8] sm:$0xff]
    %v81 = vld [vmem:[#allocation2 + $0xd0] sm:$0xff]
    %v82 = vld [vmem:[#allocation2 + $0xd8] sm:$0xff]
    %v83 = vld [vmem:[#allocation2 + $0xe0] sm:$0xff]
    %v84 = vld [vmem:[#allocation2 + $0xe8] sm:$0xff]
    %v85 = vld [vmem:[#allocation2 + $0xf0] sm:$0xff]
    %v86 = vld [vmem:[#allocation2 + $0xf8] sm:$0xff]
    %v87 = vld [vmem:[#allocation2 + $0x100] sm:$0xff]
    %v88 = vld [vmem:[#allocation2 + $0x108] sm:$0xff]
    %v89 = vld [vmem:[#allocation2 + $0x110] sm:$0xff]
    %v90 = vld [vmem:[#allocation2 + $0x118] sm:$0xff]
    %v91 = vld [vmem:[#allocation2 + $0x120] sm:$0xff]
    %v92 = vld [vmem:[#allocation2 + $0x128] sm:$0xff]
    %v93 = vld [vmem:[#allocation2 + $0x130] sm:$0xff]
    %v94 = vld [vmem:[#allocation2 + $0x138] sm:$0xff]
    %v95 = vld [vmem:[#allocation2 + $0x140] sm:$0xff]
    %v96 = vld [vmem:[#allocation2 + $0x148] sm:$0xff]
    %v97 = vld [vmem:[#allocation2 + $0x150] sm:$0xff]
    %v98 = vld [vmem:[#allocation2 + $0x158] sm:$0xff]
    %v99 = vld [vmem:[#allocation2 + $0x160] sm:$0xff]
    %v100 = vld [vmem:[#allocation2 + $0x168] sm:$0xff]
    %v101 = vld [vmem:[#allocation2 + $0x170] sm:$0xff]
    %v102 = vld [vmem:[#allocation2 + $0x178] sm:$0xff]
    %v103 = vld [vmem:[#allocation2 + $0x180] sm:$0xff]
    %v104 = vld [vmem:[#allocation2 + $0x188] sm:$0xff]
    %v105 = vld [vmem:[#allocation2 + $0x190] sm:$0xff]
    %v106 = vld [vmem:[#allocation2 + $0x198] sm:$0xff]
    %v107 = vld [vmem:[#allocation2 + $0x1a0] sm:$0xff]
    %v108 = vld [vmem:[#allocation2 + $0x1a8] sm:$0xff]
    %v109 = vld [vmem:[#allocation2 + $0x1b0] sm:$0xff]
    %v110 = vld [vmem:[#allocation2 + $0x1b8] sm:$0xff]
    %v111 = vld [vmem:[#allocation2 + $0x1c0] sm:$0xff]
    %v112 = vld [vmem:[#allocation2 + $0x1c8] sm:$0xff]
    %v113 = vld [vmem:[#allocation2 + $0x1d0] sm:$0xff]
    %v114 = vld [vmem:[#allocation2 + $0x1d8] sm:$0xff]
    %v115 = vld [vmem:[#allocation2 + $0x1e0] sm:$0xff]
    %v116 = vld [vmem:[#allocation2 + $0x1e8] sm:$0xff]
    %v117 = vld [vmem:[#allocation2 + $0x1f0] sm:$0xff]
    %v118 = vld [vmem:[#allocation2 + $0x1f8] sm:$0xff]
    %v119 = vld [vmem:[#allocation2 + $0x200] sm:$0xff]
    %v120 = vld [vmem:[#allocation2 + $0x208] sm:$0xff]
    %v121 = vld [vmem:[#allocation2 + $0x210] sm:$0xff]
    %v122 = vld [vmem:[#allocation2 + $0x218] sm:$0xff]
    %v123 = vld [vmem:[#allocation2 + $0x220] sm:$0xff]
    %v124 = vld [vmem:[#allocation2 + $0x228] sm:$0xff]
    %v125 = vld [vmem:[#allocation2 + $0x230] sm:$0xff]
    %v126 = vld [vmem:[#allocation2 + $0x238] sm:$0xff]
    %v127 = vld [vmem:[#allocation2 + $0x240] sm:$0xff]
    %v128 = vld [vmem:[#allocation2 + $0x248] sm:$0xff]
    %v129 = vld [vmem:[#allocation2 + $0x250] sm:$0xff]
    %v130 = vld [vmem:[#allocation2 + $0x258] sm:$0xff]
    %v131 = vld [vmem:[#allocation2 + $0x260] sm:$0xff]
    %v132 = vld [vmem:[#allocation2 + $0x268] sm:$0xff]
    %v133 = vld [vmem:[#allocation2 + $0x270] sm:$0xff]
    %v134 = vld [vmem:[#allocation2 + $0x278] sm:$0xff]
    %v135 = vld [vmem:[#allocation2 + $0x280] sm:$0xff]
    %v136 = vld [vmem:[#allocation2 + $0x288] sm:$0xff]
    %v137 = vld [vmem:[#allocation2 + $0x290] sm:$0xff]
    %v138 = vld [vmem:[#allocation2 + $0x298] sm:$0xff]
    %v139 = vld [vmem:[#allocation2 + $0x2a0] sm:$0xff]
    %v140 = vld [vmem:[#allocation2 + $0x2a8] sm:$0xff]
    %v141 = vld [vmem:[#allocation2 + $0x2b0] sm:$0xff]
    %v142 = vld [vmem:[#allocation2 + $0x2b8] sm:$0xff]
    %v143 = vld [vmem:[#allocation2 + $0x2c0] sm:$0xff]
    %v144 = vld [vmem:[#allocation2 + $0x2c8] sm:$0xff]
    %v145 = vld [vmem:[#allocation2 + $0x2d0] sm:$0xff]
    %v146 = vld [vmem:[#allocation2 + $0x2d8] sm:$0xff]
    %v147 = vld [vmem:[#allocation2 + $0x2e0] sm:$0xff]
    %v148 = vld [vmem:[#allocation2 + $0x2e8] sm:$0xff]
    %v149 = vld [vmem:[#allocation2 + $0x2f0] sm:$0xff]
    %v150 = vld [vmem:[#allocation2 + $0x2f8] sm:$0xff]
    %v151 = vld [vmem:[#allocation2 + $0x300] sm:$0xff]
    %v152 = vld [vmem:[#allocation2 + $0x308] sm:$0xff]
    %v153 = vld [vmem:[%s4] sm:$0x3]
    %v155 = vlaneseq
    %v156 = vshrl.u32 %v155, 7
    %v157 = vsub.s32 0, %v156
    %v158 = vrot.slane %v153, %v157
    %v159 = vlaneseq
    %v160 = vshrl.u32 %v159, 7
    %v161 = vsub.s32 1, %v160
    %v162 = vrot.slane %v153, %v161
    %v263 = vunpack.c.l.b16 %v55
    %v264 = vunpack.c.h.b16 %v55
    %v265 = vunpack.c.l.b16 %v56
    %v266 = vunpack.c.h.b16 %v56
    %v267 = vunpack.c.l.b16 %v57
    %v268 = vunpack.c.h.b16 %v57
    %v269 = vunpack.c.l.b16 %v58
    %v270 = vunpack.c.h.b16 %v58
    %v271 = vunpack.c.l.b16 %v59
    %v272 = vunpack.c.h.b16 %v59
    %v273 = vunpack.c.l.b16 %v60
    %v274 = vunpack.c.h.b16 %v60
    %v275 = vunpack.c.l.b16 %v61
    %v276 = vunpack.c.h.b16 %v61
    %v277 = vunpack.c.l.b16 %v62
    %v278 = vunpack.c.h.b16 %v62
    %v279 = vunpack.c.l.b16 %v63
    %v280 = vunpack.c.h.b16 %v63
    %v281 = vunpack.c.l.b16 %v64
    %v282 = vunpack.c.h.b16 %v64
    %v283 = vunpack.c.l.b16 %v65
    %v284 = vunpack.c.h.b16 %v65
    %v285 = vunpack.c.l.b16 %v66
    %v286 = vunpack.c.h.b16 %v66
    %v287 = vunpack.c.l.b16 %v67
    %v288 = vunpack.c.h.b16 %v67
    %v289 = vunpack.c.l.b16 %v68
    %v290 = vunpack.c.h.b16 %v68
    %v291 = vunpack.c.l.b16 %v69
    %v292 = vunpack.c.h.b16 %v69
    %v293 = vunpack.c.l.b16 %v70
    %v294 = vunpack.c.h.b16 %v70
    %v295 = vunpack.c.l.b16 %v71
    %v296 = vunpack.c.h.b16 %v71
    %v297 = vunpack.c.l.b16 %v72
    %v298 = vunpack.c.h.b16 %v72
    %v299 = vunpack.c.l.b16 %v73
    %v300 = vunpack.c.h.b16 %v73
    %v301 = vunpack.c.l.b16 %v74
    %v302 = vunpack.c.h.b16 %v74
    %v303 = vunpack.c.l.b16 %v75
    %v304 = vunpack.c.h.b16 %v75
    %v305 = vunpack.c.l.b16 %v76
    %v306 = vunpack.c.h.b16 %v76
    %v307 = vunpack.c.l.b16 %v77
    %v308 = vunpack.c.h.b16 %v77
    %v309 = vunpack.c.l.b16 %v78
    %v310 = vunpack.c.h.b16 %v78
    %v311 = vunpack.c.l.b16 %v79
    %v312 = vunpack.c.h.b16 %v79
    %v313 = vunpack.c.l.b16 %v80
    %v314 = vunpack.c.h.b16 %v80
    %v315 = vunpack.c.l.b16 %v81
    %v316 = vunpack.c.h.b16 %v81
    %v317 = vunpack.c.l.b16 %v82
    %v318 = vunpack.c.h.b16 %v82
    %v319 = vunpack.c.l.b16 %v83
    %v320 = vunpack.c.h.b16 %v83
    %v321 = vunpack.c.l.b16 %v84
    %v322 = vunpack.c.h.b16 %v84
    %v323 = vunpack.c.l.b16 %v85
    %v324 = vunpack.c.h.b16 %v85
    %v325 = vunpack.c.l.b16 %v86
    %v326 = vunpack.c.h.b16 %v86
    %v327 = vunpack.c.l.b16 %v87
    %v328 = vunpack.c.h.b16 %v87
    %v329 = vunpack.c.l.b16 %v88
    %v330 = vunpack.c.h.b16 %v88
    %v331 = vunpack.c.l.b16 %v89
    %v332 = vunpack.c.h.b16 %v89
    %v333 = vunpack.c.l.b16 %v90
    %v334 = vunpack.c.h.b16 %v90
    %v335 = vunpack.c.l.b16 %v91
    %v336 = vunpack.c.h.b16 %v91
    %v337 = vunpack.c.l.b16 %v92
    %v338 = vunpack.c.h.b16 %v92
    %v339 = vunpack.c.l.b16 %v93
    %v340 = vunpack.c.h.b16 %v93
    %v341 = vunpack.c.l.b16 %v94
    %v342 = vunpack.c.h.b16 %v94
    %v343 = vunpack.c.l.b16 %v95
    %v344 = vunpack.c.h.b16 %v95
    %v345 = vunpack.c.l.b16 %v96
    %v346 = vunpack.c.h.b16 %v96
    %v347 = vunpack.c.l.b16 %v97
    %v348 = vunpack.c.h.b16 %v97
    %v349 = vunpack.c.l.b16 %v98
    %v350 = vunpack.c.h.b16 %v98
    %v351 = vunpack.c.l.b16 %v99
    %v352 = vunpack.c.h.b16 %v99
    %v353 = vunpack.c.l.b16 %v100
    %v354 = vunpack.c.h.b16 %v100
    %v355 = vunpack.c.l.b16 %v101
    %v356 = vunpack.c.h.b16 %v101
    %v357 = vunpack.c.l.b16 %v102
    %v358 = vunpack.c.h.b16 %v102
    %v359 = vunpack.c.l.b16 %v103
    %v360 = vunpack.c.h.b16 %v103
    %v361 = vunpack.c.l.b16 %v104
    %v362 = vunpack.c.h.b16 %v104
    %v363 = vunpack.c.l.b16 %v105
    %v364 = vunpack.c.h.b16 %v105
    %v365 = vunpack.c.l.b16 %v106
    %v366 = vunpack.c.h.b16 %v106
    %v367 = vunpack.c.l.b16 %v107
    %v368 = vunpack.c.h.b16 %v107
    %v369 = vunpack.c.l.b16 %v108
    %v370 = vunpack.c.h.b16 %v108
    %v371 = vunpack.c.l.b16 %v109
    %v372 = vunpack.c.h.b16 %v109
    %v373 = vunpack.c.l.b16 %v110
    %v374 = vunpack.c.h.b16 %v110
    %v375 = vunpack.c.l.b16 %v111
    %v376 = vunpack.c.h.b16 %v111
    %v377 = vunpack.c.l.b16 %v112
    %v378 = vunpack.c.h.b16 %v112
    %v379 = vunpack.c.l.b16 %v113
    %v380 = vunpack.c.h.b16 %v113
    %v381 = vunpack.c.l.b16 %v114
    %v382 = vunpack.c.h.b16 %v114
    %v383 = vunpack.c.l.b16 %v115
    %v384 = vunpack.c.h.b16 %v115
    %v385 = vunpack.c.l.b16 %v116
    %v386 = vunpack.c.h.b16 %v116
    %v387 = vunpack.c.l.b16 %v117
    %v388 = vunpack.c.h.b16 %v117
    %v389 = vunpack.c.l.b16 %v118
    %v390 = vunpack.c.h.b16 %v118
    %v391 = vunpack.c.l.b16 %v119
    %v392 = vunpack.c.h.b16 %v119
    %v393 = vunpack.c.l.b16 %v120
    %v394 = vunpack.c.h.b16 %v120
    %v395 = vunpack.c.l.b16 %v121
    %v396 = vunpack.c.h.b16 %v121
    %v397 = vunpack.c.l.b16 %v122
    %v398 = vunpack.c.h.b16 %v122
    %v399 = vunpack.c.l.b16 %v123
    %v400 = vunpack.c.h.b16 %v123
    %v401 = vunpack.c.l.b16 %v124
    %v402 = vunpack.c.h.b16 %v124
    %v403 = vunpack.c.l.b16 %v125
    %v404 = vunpack.c.h.b16 %v125
    %v405 = vunpack.c.l.b16 %v126
    %v406 = vunpack.c.h.b16 %v126
    %v407 = vunpack.c.l.b16 %v127
    %v408 = vunpack.c.h.b16 %v127
    %v409 = vunpack.c.l.b16 %v128
    %v410 = vunpack.c.h.b16 %v128
    %v411 = vunpack.c.l.b16 %v129
    %v412 = vunpack.c.h.b16 %v129
    %v413 = vunpack.c.l.b16 %v130
    %v414 = vunpack.c.h.b16 %v130
    %v415 = vunpack.c.l.b16 %v131
    %v416 = vunpack.c.h.b16 %v131
    %v417 = vunpack.c.l.b16 %v132
    %v418 = vunpack.c.h.b16 %v132
    %v419 = vunpack.c.l.b16 %v133
    %v420 = vunpack.c.h.b16 %v133
    %v421 = vunpack.c.l.b16 %v134
    %v422 = vunpack.c.h.b16 %v134
    %v423 = vunpack.c.l.b16 %v135
    %v424 = vunpack.c.h.b16 %v135
    %v425 = vunpack.c.l.b16 %v136
    %v426 = vunpack.c.h.b16 %v136
    %v427 = vunpack.c.l.b16 %v137
    %v428 = vunpack.c.h.b16 %v137
    %v429 = vunpack.c.l.b16 %v138
    %v430 = vunpack.c.h.b16 %v138
    %v431 = vunpack.c.l.b16 %v139
    %v432 = vunpack.c.h.b16 %v139
    %v433 = vunpack.c.l.b16 %v140
    %v434 = vunpack.c.h.b16 %v140
    %v435 = vunpack.c.l.b16 %v141
    %v436 = vunpack.c.h.b16 %v141
    %v437 = vunpack.c.l.b16 %v142
    %v438 = vunpack.c.h.b16 %v142
    %v439 = vunpack.c.l.b16 %v143
    %v440 = vunpack.c.h.b16 %v143
    %v441 = vunpack.c.l.b16 %v144
    %v442 = vunpack.c.h.b16 %v144
    %v443 = vunpack.c.l.b16 %v145
    %v444 = vunpack.c.h.b16 %v145
    %v445 = vunpack.c.l.b16 %v146
    %v446 = vunpack.c.h.b16 %v146
    %v447 = vunpack.c.l.b16 %v147
    %v448 = vunpack.c.h.b16 %v147
    %v449 = vunpack.c.l.b16 %v148
    %v450 = vunpack.c.h.b16 %v148
    %v451 = vunpack.c.l.b16 %v149
    %v452 = vunpack.c.h.b16 %v149
    %v453 = vunpack.c.l.b16 %v150
    %v454 = vunpack.c.h.b16 %v150
    %v455 = vunpack.c.l.b16 %v151
    %v456 = vunpack.c.h.b16 %v151
    %v457 = vunpack.c.l.b16 %v152
    %v458 = vunpack.c.h.b16 %v152
    %v459 = vpack.c.b16 %v265, %v263
    %v460 = vpack.c.b16 %v266, %v264
    %v461 = vpack.c.b16 %v269, %v267
    %v462 = vpack.c.b16 %v270, %v268
    %v463 = vpack.c.b16 %v273, %v271
    %v464 = vpack.c.b16 %v274, %v272
    %v465 = vpack.c.b16 %v277, %v275
    %v466 = vpack.c.b16 %v278, %v276
    %v467 = vpack.c.b16 %v281, %v279
    %v468 = vpack.c.b16 %v282, %v280
    %v469 = vpack.c.b16 %v285, %v283
    %v470 = vpack.c.b16 %v286, %v284
    %v471 = vpack.c.b16 %v289, %v287
    %v472 = vpack.c.b16 %v290, %v288
    %v473 = vpack.c.b16 %v293, %v291
    %v474 = vpack.c.b16 %v294, %v292
    %v475 = vpack.c.b16 %v297, %v295
    %v476 = vpack.c.b16 %v298, %v296
    %v477 = vpack.c.b16 %v301, %v299
    %v478 = vpack.c.b16 %v302, %v300
    %v479 = vpack.c.b16 %v305, %v303
    %v480 = vpack.c.b16 %v306, %v304
    %v481 = vpack.c.b16 %v309, %v307
    %v482 = vpack.c.b16 %v310, %v308
    %v483 = vpack.c.b16 %v313, %v311
    %v484 = vpack.c.b16 %v314, %v312
    %v485 = vpack.c.b16 %v317, %v315
    %v486 = vpack.c.b16 %v318, %v316
    %v487 = vpack.c.b16 %v321, %v319
    %v488 = vpack.c.b16 %v322, %v320
    %v489 = vpack.c.b16 %v325, %v323
    %v490 = vpack.c.b16 %v326, %v324
    %v491 = vpack.c.b16 %v329, %v327
    %v492 = vpack.c.b16 %v330, %v328
    %v493 = vpack.c.b16 %v333, %v331
    %v494 = vpack.c.b16 %v334, %v332
    %v495 = vpack.c.b16 %v337, %v335
    %v496 = vpack.c.b16 %v338, %v336
    %v497 = vpack.c.b16 %v341, %v339
    %v498 = vpack.c.b16 %v342, %v340
    %v499 = vpack.c.b16 %v345, %v343
    %v500 = vpack.c.b16 %v346, %v344
    %v501 = vpack.c.b16 %v349, %v347
    %v502 = vpack.c.b16 %v350, %v348
    %v503 = vpack.c.b16 %v353, %v351
    %v504 = vpack.c.b16 %v354, %v352
    %v505 = vpack.c.b16 %v357, %v355
    %v506 = vpack.c.b16 %v358, %v356
    %v507 = vpack.c.b16 %v361, %v359
    %v508 = vpack.c.b16 %v362, %v360
    %v509 = vpack.c.b16 %v365, %v363
    %v510 = vpack.c.b16 %v366, %v364
    %v511 = vpack.c.b16 %v369, %v367
    %v512 = vpack.c.b16 %v370, %v368
    %v513 = vpack.c.b16 %v373, %v371
    %v514 = vpack.c.b16 %v374, %v372
    %v515 = vpack.c.b16 %v377, %v375
    %v516 = vpack.c.b16 %v378, %v376
    %v517 = vpack.c.b16 %v381, %v379
    %v518 = vpack.c.b16 %v382, %v380
    %v519 = vpack.c.b16 %v385, %v383
    %v520 = vpack.c.b16 %v386, %v384
    %v521 = vpack.c.b16 %v389, %v387
    %v522 = vpack.c.b16 %v390, %v388
    %v523 = vpack.c.b16 %v393, %v391
    %v524 = vpack.c.b16 %v394, %v392
    %v525 = vpack.c.b16 %v397, %v395
    %v526 = vpack.c.b16 %v398, %v396
    %v527 = vpack.c.b16 %v401, %v399
    %v528 = vpack.c.b16 %v402, %v400
    %v529 = vpack.c.b16 %v405, %v403
    %v530 = vpack.c.b16 %v406, %v404
    %v531 = vpack.c.b16 %v409, %v407
    %v532 = vpack.c.b16 %v410, %v408
    %v533 = vpack.c.b16 %v413, %v411
    %v534 = vpack.c.b16 %v414, %v412
    %v535 = vpack.c.b16 %v417, %v415
    %v536 = vpack.c.b16 %v418, %v416
    %v537 = vpack.c.b16 %v421, %v419
    %v538 = vpack.c.b16 %v422, %v420
    %v539 = vpack.c.b16 %v425, %v423
    %v540 = vpack.c.b16 %v426, %v424
    %v541 = vpack.c.b16 %v429, %v427
    %v542 = vpack.c.b16 %v430, %v428
    %v543 = vpack.c.b16 %v433, %v431
    %v544 = vpack.c.b16 %v434, %v432
    %v545 = vpack.c.b16 %v437, %v435
    %v546 = vpack.c.b16 %v438, %v436
    %v547 = vpack.c.b16 %v441, %v439
    %v548 = vpack.c.b16 %v442, %v440
    %v549 = vpack.c.b16 %v445, %v443
    %v550 = vpack.c.b16 %v446, %v444
    %v551 = vpack.c.b16 %v449, %v447
    %v552 = vpack.c.b16 %v450, %v448
    %v553 = vpack.c.b16 %v453, %v451
    %v554 = vpack.c.b16 %v454, %v452
    %v555 = vpack.c.b16 %v457, %v455
    %v556 = vpack.c.b16 %v458, %v456
    %vm655 = vcmask 130048
    %v657 = vsel %vm655, %v54, 0
    %659 = vmatprep.subr.bf16.mxu0 %v460
    %660 = vmatpush1.bf16.msra.mxu0 %v459
    %661 = vmatprep.subr.bf16.mxu0 %v462
    %662 = vmatpush1.bf16.msra.mxu0 %v461
    %663 = vmatprep.subr.bf16.mxu0 %v464
    %664 = vmatpush1.bf16.msra.mxu0 %v463
    %665 = vmatprep.subr.bf16.mxu0 %v466
    %666 = vmatpush1.bf16.msra.mxu0 %v465
    %667 = vmatprep.subr.bf16.mxu0 %v468
    %668 = vmatpush1.bf16.msra.mxu0 %v467
    %669 = vmatprep.subr.bf16.mxu0 %v470
    %670 = vmatpush1.bf16.msra.mxu0 %v469
    %671 = vmatprep.subr.bf16.mxu0 %v472
    %672 = vmatpush1.bf16.msra.mxu0 %v471
    %673 = vmatprep.subr.bf16.mxu0 %v474
    %674 = vmatpush1.bf16.msra.mxu0 %v473
    %675 = vmatprep.subr.bf16.mxu0 %v476
    %676 = vmatpush1.bf16.msra.mxu0 %v475
    %677 = vmatprep.subr.bf16.mxu0 %v478
    %678 = vmatpush1.bf16.msra.mxu0 %v477
    %679 = vmatprep.subr.bf16.mxu0 %v480
    %680 = vmatpush1.bf16.msra.mxu0 %v479
    %681 = vmatprep.subr.bf16.mxu0 %v482
    %682 = vmatpush1.bf16.msra.mxu0 %v481
    %683 = vmatprep.subr.bf16.mxu0 %v484
    %684 = vmatpush1.bf16.msra.mxu0 %v483
    %685 = vmatprep.subr.bf16.mxu0 %v486
    %686 = vmatpush1.bf16.msra.mxu0 %v485
    %687 = vmatprep.subr.bf16.mxu0 %v488
    %688 = vmatpush1.bf16.msra.mxu0 %v487
    %689 = vmatprep.subr.bf16.mxu0 %v490
    %690 = vmatpush1.bf16.msra.mxu0 %v489
    %691 = vmatprep.mubr.bf16.mxu0 %v49
    %692 = vmatmul.mubr.bf16.gmra.mrb[0].mxu0 %v48
    %v693 = vpop.f32.mrb[0].mxu0
    %v694 = vadd.f32 %v158, %v693
    %v695 = vpop.f32.mrb[0].mxu0
    %v696 = vadd.f32 %v162, %v695
    %v697 = vpop.f32.mrb[0].mxu0
    %v698 = vpop.f32.mrb[0].mxu0
    %699 = vdwg.mxu0
    %700 = vmatprep.subr.bf16.mxu0 %v492
    %701 = vmatpush1.bf16.msra.mxu0 %v491
    %702 = vmatprep.subr.bf16.mxu0 %v494
    %703 = vmatpush1.bf16.msra.mxu0 %v493
    %704 = vmatprep.subr.bf16.mxu0 %v496
    %705 = vmatpush1.bf16.msra.mxu0 %v495
    %706 = vmatprep.subr.bf16.mxu0 %v498
    %707 = vmatpush1.bf16.msra.mxu0 %v497
    %708 = vmatprep.subr.bf16.mxu0 %v500
    %709 = vmatpush1.bf16.msra.mxu0 %v499
    %710 = vmatprep.subr.bf16.mxu0 %v502
    %711 = vmatpush1.bf16.msra.mxu0 %v501
    %712 = vmatprep.subr.bf16.mxu0 %v504
    %713 = vmatpush1.bf16.msra.mxu0 %v503
    %714 = vmatprep.subr.bf16.mxu0 %v506
    %715 = vmatpush1.bf16.msra.mxu0 %v505
    %716 = vmatprep.subr.bf16.mxu0 %v508
    %717 = vmatpush1.bf16.msra.mxu0 %v507
    %718 = vmatprep.subr.bf16.mxu0 %v510
    %719 = vmatpush1.bf16.msra.mxu0 %v509
    %720 = vmatprep.subr.bf16.mxu0 %v512
    %721 = vmatpush1.bf16.msra.mxu0 %v511
    %722 = vmatprep.subr.bf16.mxu0 %v514
    %723 = vmatpush1.bf16.msra.mxu0 %v513
    %724 = vmatprep.subr.bf16.mxu0 %v516
    %725 = vmatpush1.bf16.msra.mxu0 %v515
    %726 = vmatprep.subr.bf16.mxu0 %v518
    %727 = vmatpush1.bf16.msra.mxu0 %v517
    %728 = vmatprep.subr.bf16.mxu0 %v520
    %729 = vmatpush1.bf16.msra.mxu0 %v519
    %730 = vmatprep.subr.bf16.mxu0 %v522
    %731 = vmatpush1.bf16.msra.mxu0 %v521
    %732 = vmatprep.mubr.bf16.mxu0 %v51
    %733 = vmatmul.mubr.bf16.gmra.mrb[0].mxu0 %v50
    %v734 = vpop.f32.mrb[0].mxu0
    %v735 = vadd.f32 %v694, %v734
    %v736 = vpop.f32.mrb[0].mxu0
    %v737 = vadd.f32 %v696, %v736
    %v738 = vpop.f32.mrb[0].mxu0
    %v739 = vpop.f32.mrb[0].mxu0
    %740 = vdwg.mxu0
    %741 = vmatprep.subr.bf16.mxu0 %v524
    %742 = vmatpush1.bf16.msra.mxu0 %v523
    %743 = vmatprep.subr.bf16.mxu0 %v526
    %744 = vmatpush1.bf16.msra.mxu0 %v525
    %745 = vmatprep.subr.bf16.mxu0 %v528
    %746 = vmatpush1.bf16.msra.mxu0 %v527
    %747 = vmatprep.subr.bf16.mxu0 %v530
    %748 = vmatpush1.bf16.msra.mxu0 %v529
    %749 = vmatprep.subr.bf16.mxu0 %v532
    %750 = vmatpush1.bf16.msra.mxu0 %v531
    %751 = vmatprep.subr.bf16.mxu0 %v534
    %752 = vmatpush1.bf16.msra.mxu0 %v533
    %753 = vmatprep.subr.bf16.mxu0 %v536
    %754 = vmatpush1.bf16.msra.mxu0 %v535
    %755 = vmatprep.subr.bf16.mxu0 %v538
    %756 = vmatpush1.bf16.msra.mxu0 %v537
    %757 = vmatprep.subr.bf16.mxu0 %v540
    %758 = vmatpush1.bf16.msra.mxu0 %v539
    %759 = vmatprep.subr.bf16.mxu0 %v542
    %760 = vmatpush1.bf16.msra.mxu0 %v541
    %761 = vmatprep.subr.bf16.mxu0 %v544
    %762 = vmatpush1.bf16.msra.mxu0 %v543
    %763 = vmatprep.subr.bf16.mxu0 %v546
    %764 = vmatpush1.bf16.msra.mxu0 %v545
    %765 = vmatprep.subr.bf16.mxu0 %v548
    %766 = vmatpush1.bf16.msra.mxu0 %v547
    %767 = vmatprep.subr.bf16.mxu0 %v550
    %768 = vmatpush1.bf16.msra.mxu0 %v549
    %769 = vmatprep.subr.bf16.mxu0 %v552
    %770 = vmatpush1.bf16.msra.mxu0 %v551
    %771 = vmatprep.subr.bf16.mxu0 %v554
    %772 = vmatpush1.bf16.msra.mxu0 %v553
    %773 = vmatprep.mubr.bf16.mxu0 %v53
    %774 = vmatmul.mubr.bf16.gmra.mrb[0].mxu0 %v52
    %v775 = vpop.f32.mrb[0].mxu0
    %v776 = vadd.f32 %v735, %v775
    %v777 = vpop.f32.mrb[0].mxu0
    %v778 = vadd.f32 %v737, %v777
    %v779 = vpop.f32.mrb[0].mxu0
    %v780 = vpop.f32.mrb[0].mxu0
    %781 = vdwg.mxu0
    %782 = vmatprep.subr.bf16.mxu0 %v556
    %783 = vmatpush1.bf16.msra.mxu0 %v555
    %784 = vmatprep.subr.bf16.mxu0 0
    %785 = vmatpush1.bf16.msra.mxu0 0
    %786 = vmatprep.subr.bf16.mxu0 0
    %787 = vmatpush1.bf16.msra.mxu0 0
    %788 = vmatprep.subr.bf16.mxu0 0
    %789 = vmatpush1.bf16.msra.mxu0 0
    %790 = vmatprep.subr.bf16.mxu0 0
    %791 = vmatpush1.bf16.msra.mxu0 0
    %792 = vmatprep.subr.bf16.mxu0 0
    %793 = vmatpush1.bf16.msra.mxu0 0
    %794 = vmatprep.subr.bf16.mxu0 0
    %795 = vmatpush1.bf16.msra.mxu0 0
    %796 = vmatprep.subr.bf16.mxu0 0
    %797 = vmatpush1.bf16.msra.mxu0 0
    %798 = vmatprep.subr.bf16.mxu0 0
    %799 = vmatpush1.bf16.msra.mxu0 0
    %800 = vmatprep.subr.bf16.mxu0 0
    %801 = vmatpush1.bf16.msra.mxu0 0
    %802 = vmatprep.subr.bf16.mxu0 0
    %803 = vmatpush1.bf16.msra.mxu0 0
    %804 = vmatprep.subr.bf16.mxu0 0
    %805 = vmatpush1.bf16.msra.mxu0 0
    %806 = vmatprep.subr.bf16.mxu0 0
    %807 = vmatpush1.bf16.msra.mxu0 0
    %808 = vmatprep.subr.bf16.mxu0 0
    %809 = vmatpush1.bf16.msra.mxu0 0
    %810 = vmatprep.subr.bf16.mxu0 0
    %811 = vmatpush1.bf16.msra.mxu0 0
    %812 = vmatprep.subr.bf16.mxu0 0
    %813 = vmatpush1.bf16.msra.mxu0 0
    %814 = vmatprep.mubr.bf16.mxu0 0
    %815 = vmatmul.mubr.bf16.gmra.mrb[0].mxu0 %v657
    %v816 = vpop.f32.mrb[0].mxu0
    %v817 = vadd.f32 %v776, %v816
    %v818 = vpop.f32.mrb[0].mxu0
    %v819 = vadd.f32 %v778, %v818
    %v820 = vpop.f32.mrb[0].mxu0
    %v821 = vpop.f32.mrb[0].mxu0
    %822 = vdwg.mxu0
    %v823 = vmax.f32 %v817, 0.0
    %v824 = vmax.f32 %v819, 0.0
    %v825 = vpack.c.bf16 %v823, %v823
    %v826 = vpack.c.bf16 %v824, %v824
    %v827 = vld [vmem:[%s2] sm:$0xf]
    %v828 = vld [vmem:[%s2 + $0x4] sm:$0xf]
    %v829 = vld [vmem:[%s2 + $0x8] sm:$0xf]
    %v830 = vld [vmem:[%s2 + $0xc] sm:$0xf]
    %v831 = vld [vmem:[%s2 + $0x10] sm:$0xf]
    %v832 = vld [vmem:[%s2 + $0x14] sm:$0xf]
    %v833 = vld [vmem:[%s2 + $0x18] sm:$0xf]
    %v834 = vld [vmem:[%s2 + $0x1c] sm:$0xf]
    %v835 = vld [vmem:[%s2 + $0x20] sm:$0xf]
    %v836 = vld [vmem:[%s2 + $0x24] sm:$0xf]
    %v837 = vld [vmem:[%s2 + $0x28] sm:$0xf]
    %v838 = vld [vmem:[%s2 + $0x2c] sm:$0xf]
    %v839 = vld [vmem:[%s2 + $0x30] sm:$0xf]
    %v840 = vld [vmem:[%s2 + $0x34] sm:$0xf]
    %v841 = vld [vmem:[%s2 + $0x38] sm:$0xf]
    %v842 = vld [vmem:[%s2 + $0x3c] sm:$0xf]
    %v843 = vld [vmem:[%s2 + $0x40] sm:$0xf]
    %v844 = vld [vmem:[%s2 + $0x44] sm:$0xf]
    %v845 = vld [vmem:[%s2 + $0x48] sm:$0xf]
    %v846 = vld [vmem:[%s2 + $0x4c] sm:$0xf]
    %v847 = vld [vmem:[%s2 + $0x50] sm:$0xf]
    %v848 = vld [vmem:[%s2 + $0x54] sm:$0xf]
    %v849 = vld [vmem:[%s2 + $0x58] sm:$0xf]
    %v850 = vld [vmem:[%s2 + $0x5c] sm:$0xf]
    %v851 = vld [vmem:[%s2 + $0x60] sm:$0xf]
    %v852 = vld [vmem:[%s2 + $0x64] sm:$0xf]
    %v853 = vld [vmem:[%s2 + $0x68] sm:$0xf]
    %v854 = vld [vmem:[%s2 + $0x6c] sm:$0xf]
    %v855 = vld [vmem:[%s2 + $0x70] sm:$0xf]
    %v856 = vld [vmem:[%s2 + $0x74] sm:$0xf]
    %v857 = vld [vmem:[%s2 + $0x78] sm:$0xf]
    %v858 = vld [vmem:[%s2 + $0x7c] sm:$0xf]
    %v859 = vld [vmem:[%s5] sm:$0x1]
    %v861 = vlaneseq
    %v862 = vshrl.u32 %v861, 7
    %v863 = vsub.s32 0, %v862
    %v864 = vrot.slane %v859, %v863
    %v898 = vunpack.c.l.b16 %v827
    %v899 = vunpack.c.l.b16 %v828
    %v900 = vunpack.c.l.b16 %v829
    %v901 = vunpack.c.l.b16 %v830
    %v902 = vunpack.c.l.b16 %v831
    %v903 = vunpack.c.l.b16 %v832
    %v904 = vunpack.c.l.b16 %v833
    %v905 = vunpack.c.l.b16 %v834
    %v906 = vunpack.c.l.b16 %v835
    %v907 = vunpack.c.l.b16 %v836
    %v908 = vunpack.c.l.b16 %v837
    %v909 = vunpack.c.l.b16 %v838
    %v910 = vunpack.c.l.b16 %v839
    %v911 = vunpack.c.l.b16 %v840
    %v912 = vunpack.c.l.b16 %v841
    %v913 = vunpack.c.l.b16 %v842
    %v914 = vunpack.c.l.b16 %v843
    %v915 = vunpack.c.l.b16 %v844
    %v916 = vunpack.c.l.b16 %v845
    %v917 = vunpack.c.l.b16 %v846
    %v918 = vunpack.c.l.b16 %v847
    %v919 = vunpack.c.l.b16 %v848
    %v920 = vunpack.c.l.b16 %v849
    %v921 = vunpack.c.l.b16 %v850
    %v922 = vunpack.c.l.b16 %v851
    %v923 = vunpack.c.l.b16 %v852
    %v924 = vunpack.c.l.b16 %v853
    %v925 = vunpack.c.l.b16 %v854
    %v926 = vunpack.c.l.b16 %v855
    %v927 = vunpack.c.l.b16 %v856
    %v928 = vunpack.c.l.b16 %v857
    %v929 = vunpack.c.l.b16 %v858
    %v930 = vpack.c.b16 %v899, %v898
    %v931 = vpack.c.b16 %v901, %v900
    %v932 = vpack.c.b16 %v903, %v902
    %v933 = vpack.c.b16 %v905, %v904
    %v934 = vpack.c.b16 %v907, %v906
    %v935 = vpack.c.b16 %v909, %v908
    %v936 = vpack.c.b16 %v911, %v910
    %v937 = vpack.c.b16 %v913, %v912
    %v938 = vpack.c.b16 %v915, %v914
    %v939 = vpack.c.b16 %v917, %v916
    %v940 = vpack.c.b16 %v919, %v918
    %v941 = vpack.c.b16 %v921, %v920
    %v942 = vpack.c.b16 %v923, %v922
    %v943 = vpack.c.b16 %v925, %v924
    %v944 = vpack.c.b16 %v927, %v926
    %v945 = vpack.c.b16 %v929, %v928
    %962 = vmatprep.subr.bf16.mxu0 0
    %963 = vmatpush1.bf16.msra.mxu0 %v930
    %964 = vmatprep.subr.bf16.mxu0 0
    %965 = vmatpush1.bf16.msra.mxu0 %v931
    %966 = vmatprep.subr.bf16.mxu0 0
    %967 = vmatpush1.bf16.msra.mxu0 %v932
    %968 = vmatprep.subr.bf16.mxu0 0
    %969 = vmatpush1.bf16.msra.mxu0 %v933
    %970 = vmatprep.subr.bf16.mxu0 0
    %971 = vmatpush1.bf16.msra.mxu0 %v934
    %972 = vmatprep.subr.bf16.mxu0 0
    %973 = vmatpush1.bf16.msra.mxu0 %v935
    %974 = vmatprep.subr.bf16.mxu0 0
    %975 = vmatpush1.bf16.msra.mxu0 %v936
    %976 = vmatprep.subr.bf16.mxu0 0
    %977 = vmatpush1.bf16.msra.mxu0 %v937
    %978 = vmatprep.subr.bf16.mxu0 0
    %979 = vmatpush1.bf16.msra.mxu0 %v938
    %980 = vmatprep.subr.bf16.mxu0 0
    %981 = vmatpush1.bf16.msra.mxu0 %v939
    %982 = vmatprep.subr.bf16.mxu0 0
    %983 = vmatpush1.bf16.msra.mxu0 %v940
    %984 = vmatprep.subr.bf16.mxu0 0
    %985 = vmatpush1.bf16.msra.mxu0 %v941
    %986 = vmatprep.subr.bf16.mxu0 0
    %987 = vmatpush1.bf16.msra.mxu0 %v942
    %988 = vmatprep.subr.bf16.mxu0 0
    %989 = vmatpush1.bf16.msra.mxu0 %v943
    %990 = vmatprep.subr.bf16.mxu0 0
    %991 = vmatpush1.bf16.msra.mxu0 %v944
    %992 = vmatprep.subr.bf16.mxu0 0
    %993 = vmatpush1.bf16.msra.mxu0 %v945
    %994 = vmatprep.mubr.bf16.mxu0 %v826
    %995 = vmatmul.mubr.bf16.gmra.mrb[0].mxu0 %v825
    %v996 = vpop.f32.mrb[0].mxu0
    %v997 = vadd.f32 %v864, %v996
    %v998 = vpop.f32.mrb[0].mxu0
    %v999 = vpop.f32.mrb[0].mxu0
    %v1000 = vpop.f32.mrb[0].mxu0
    %1001 = vdwg.mxu0
    %v1002 = vmax.f32 %v997, 0.0
    %v1003 = vpack.c.bf16 %v1002, %v1002
    %v1004 = vld [vmem:[%s3] sm:$0xf]
    %v1005 = vld [vmem:[%s3 + $0x4] sm:$0xf]
    %v1006 = vld [vmem:[%s3 + $0x8] sm:$0xf]
    %v1007 = vld [vmem:[%s3 + $0xc] sm:$0xf]
    %v1008 = vld [vmem:[%s3 + $0x10] sm:$0xf]
    %v1009 = vld [vmem:[%s3 + $0x14] sm:$0xf]
    %v1010 = vld [vmem:[%s3 + $0x18] sm:$0xf]
    %v1011 = vld [vmem:[%s3 + $0x1c] sm:$0xf]
    %v1012 = vld [vmem:[%s3 + $0x20] sm:$0xf]
    %v1013 = vld [vmem:[%s3 + $0x24] sm:$0xf]
    %v1014 = vld [vmem:[%s3 + $0x28] sm:$0xf]
    %v1015 = vld [vmem:[%s3 + $0x2c] sm:$0xf]
    %v1016 = vld [vmem:[%s3 + $0x30] sm:$0xf]
    %v1017 = vld [vmem:[%s3 + $0x34] sm:$0xf]
    %v1018 = vld [vmem:[%s3 + $0x38] sm:$0xf]
    %v1019 = vld [vmem:[%s3 + $0x3c] sm:$0xf]
    %v1020 = vld [vmem:[%s6] sm:$0x1]
    %v1022 = vlaneseq
    %v1023 = vshrl.u32 %v1022, 7
    %v1024 = vsub.s32 0, %v1023
    %v1025 = vrot.slane %v1020, %v1024
    %v1043 = vunpack.c.l.b16 %v1004
    %v1044 = vunpack.c.l.b16 %v1005
    %v1045 = vunpack.c.l.b16 %v1006
    %v1046 = vunpack.c.l.b16 %v1007
    %v1047 = vunpack.c.l.b16 %v1008
    %v1048 = vunpack.c.l.b16 %v1009
    %v1049 = vunpack.c.l.b16 %v1010
    %v1050 = vunpack.c.l.b16 %v1011
    %v1051 = vunpack.c.l.b16 %v1012
    %v1052 = vunpack.c.l.b16 %v1013
    %v1053 = vunpack.c.l.b16 %v1014
    %v1054 = vunpack.c.l.b16 %v1015
    %v1055 = vunpack.c.l.b16 %v1016
    %v1056 = vunpack.c.l.b16 %v1017
    %v1057 = vunpack.c.l.b16 %v1018
    %v1058 = vunpack.c.l.b16 %v1019
    %v1059 = vpack.c.b16 %v1044, %v1043
    %v1060 = vpack.c.b16 %v1046, %v1045
    %v1061 = vpack.c.b16 %v1048, %v1047
    %v1062 = vpack.c.b16 %v1050, %v1049
    %v1063 = vpack.c.b16 %v1052, %v1051
    %v1064 = vpack.c.b16 %v1054, %v1053
    %v1065 = vpack.c.b16 %v1056, %v1055
    %v1066 = vpack.c.b16 %v1058, %v1057
    %1075 = vmatprep.subr.bf16.mxu0 0
    %1076 = vmatpush1.bf16.msra.mxu0 %v1059
    %1077 = vmatprep.subr.bf16.mxu0 0
    %1078 = vmatpush1.bf16.msra.mxu0 %v1060
    %1079 = vmatprep.subr.bf16.mxu0 0
    %1080 = vmatpush1.bf16.msra.mxu0 %v1061
    %1081 = vmatprep.subr.bf16.mxu0 0
    %1082 = vmatpush1.bf16.msra.mxu0 %v1062
    %1083 = vmatprep.subr.bf16.mxu0 0
    %1084 = vmatpush1.bf16.msra.mxu0 %v1063
    %1085 = vmatprep.subr.bf16.mxu0 0
    %1086 = vmatpush1.bf16.msra.mxu0 %v1064
    %1087 = vmatprep.subr.bf16.mxu0 0
    %1088 = vmatpush1.bf16.msra.mxu0 %v1065
    %1089 = vmatprep.subr.bf16.mxu0 0
    %1090 = vmatpush1.bf16.msra.mxu0 %v1066
    %1091 = vmatprep.subr.bf16.mxu0 0
    %1092 = vmatpush1.bf16.msra.mxu0 0
    %1093 = vmatprep.subr.bf16.mxu0 0
    %1094 = vmatpush1.bf16.msra.mxu0 0
    %1095 = vmatprep.subr.bf16.mxu0 0
    %1096 = vmatpush1.bf16.msra.mxu0 0
    %1097 = vmatprep.subr.bf16.mxu0 0
    %1098 = vmatpush1.bf16.msra.mxu0 0
    %1099 = vmatprep.subr.bf16.mxu0 0
    %1100 = vmatpush1.bf16.msra.mxu0 0
    %1101 = vmatprep.subr.bf16.mxu0 0
    %1102 = vmatpush1.bf16.msra.mxu0 0
    %1103 = vmatprep.subr.bf16.mxu0 0
    %1104 = vmatpush1.bf16.msra.mxu0 0
    %1105 = vmatprep.subr.bf16.mxu0 0
    %1106 = vmatpush1.bf16.msra.mxu0 0
    %1107 = vmatprep.mubr.bf16.mxu0 0
    %1108 = vmatmul.mubr.bf16.gmra.mrb[0].mxu0 %v1003
    %v1109 = vpop.f32.mrb[0].mxu0
    %v1110 = vadd.f32 %v1025, %v1109
    %v1111 = vpop.f32.mrb[0].mxu0
    %v1112 = vpop.f32.mrb[0].mxu0
    %v1113 = vpop.f32.mrb[0].mxu0
    %1114 = vdwg.mxu0
    %v1115 = vpack.c.bf16 %v1110, %v1110
    %1116 = vst [vmem:[%s7] sm:$0xf] %v1115
    // Predicated region
    $region34: #{mnist_forward_pallas.1} parent=1 // pred_check
      _
    $region35: #{mnist_forward_pallas.1} parent=1 // pred_check_branch
      %1118 = sbr.rel (0) target = $region37
    $region36: #{mnist_forward_pallas.1} parent=1 // pred_region
      _
    $region37: #{mnist_forward_pallas.1} parent=1 // pred_fallthru
      _
    // Predicated region
    $region38: #{mnist_forward_pallas.1} parent=1 // pred_check
      _
    $region39: #{mnist_forward_pallas.1} parent=1 // pred_check_branch
      %1120 = sbr.rel (0) target = $region41
    $region40: #{mnist_forward_pallas.1} parent=1 // pred_region
      _
    $region41: #{mnist_forward_pallas.1} parent=1 // pred_fallthru
      _
    %1121 = vsyncpa [#allocation3], 1

</llo_original>
